<compile_context>
chip_gen: v7x
topology: tpu7x:2x2x1
jax: 0.10.0
libtpu: 0.0.40
codegen_flags: <defaults>
</compile_context>

<pallas_src>
import functools

import jax
import jax.numpy as jnp
from jax.experimental import pallas as pl
from jax.experimental.pallas import tpu as pltpu


# ----------------------------- kernels ------------------------------------ #

def _fused_kernel(x_ref, w1t_ref, w2t_ref, o_ref, *, inv_hw):
    # x_ref:   (1, C, HW)  one full batch element (input dtype, unpadded)
    # w1t_ref: (C, Hd_pad) = W1.T (original dtype, zero-padded hidden)
    # w2t_ref: (Hd_pad, C) = W2.T
    x = x_ref[...]

    # Global average / max pool over the lane-dense last axis; f32 accumulation,
    # no full f32 copy of the tile.
    # NOTE(v5e): if bundle dumps show a per-vreg XLU lane reduce here, restructure as a
    # (C, HW//128, 128) sublane reduce followed by one 128-lane reduce per row-group.
    avg = jnp.sum(x, axis=-1, dtype=jnp.float32) * inv_hw        # (1, C)
    mx = jnp.max(x, axis=-1).astype(jnp.float32)                 # (1, C)

    # Stacked MLP: one matmul pair serves both pooled vectors (valid because the
    # second Linear is linear); padded hidden units are exactly zero.
    vm = jnp.concatenate([avg, mx], axis=0)                      # (2, C)
    h = jnp.maximum(
        jnp.dot(vm, w1t_ref[...], preferred_element_type=jnp.float32), 0.0)
    o = jnp.dot(h, w2t_ref[...], preferred_element_type=jnp.float32)
    scale = jax.nn.sigmoid(o[0:1] + o[1:2])                      # (1, C) f32

    # Rescale in the input dtype (1-load / 1-mul / 1-store stream).
    o_ref[...] = (x * scale.astype(x.dtype)[:, :, None]).astype(o_ref.dtype)


def _pool_mlp_kernel(x_ref, w1t_ref, w2t_ref, scale_ref, sum_sc, max_sc,
                     *, hw_true, hw_tile, inv_hw):
    # Tiled path, phase 1: accumulate sum/max over HW tiles, emit sigmoid scale.
    t = pl.program_id(1)
    last = pl.num_programs(1) - 1

    @pl.when(t == 0)
    def _():
        sum_sc[...] = jnp.zeros_like(sum_sc)
        max_sc[...] = jnp.full_like(max_sc, -jnp.inf)

    xt = x_ref[...]                                              # (1, C, hw_tile)
    if hw_true % hw_tile != 0:
        # Only the final HW tile is ragged; the compare/select touches a single
        # tile per step, not the whole C*HW slab.
        lane = jax.lax.broadcasted_iota(jnp.int32, xt.shape, 2)
        limit = jnp.where(t == last, hw_true % hw_tile, hw_tile)
        valid = lane < limit
        xt_sum = jnp.where(valid, xt, jnp.zeros_like(xt))
        xt_max = jnp.where(valid, xt, jnp.asarray(jnp.finfo(xt.dtype).min, xt.dtype))
    else:
        xt_sum = xt
        xt_max = xt

    sum_sc[...] = sum_sc[...] + jnp.sum(xt_sum, axis=-1, dtype=jnp.float32)
    max_sc[...] = jnp.maximum(max_sc[...], jnp.max(xt_max, axis=-1).astype(jnp.float32))

    @pl.when(t == last)
    def _():
        vm = jnp.concatenate([sum_sc[...] * inv_hw, max_sc[...]], axis=0)    # (2, C)
        h = jnp.maximum(
            jnp.dot(vm, w1t_ref[...], preferred_element_type=jnp.float32), 0.0)
        o = jnp.dot(h, w2t_ref[...], preferred_element_type=jnp.float32)
        scale_ref[...] = jax.nn.sigmoid(o[0:1] + o[1:2])[:, :, None]          # (1, C, 1)


def _rescale_kernel(x_ref, scale_ref, o_ref):
    # Tiled path, phase 2: x tile * per-channel scale (fully parallel grid).
    x = x_ref[...]                                               # (1, C, hw_tile)
    scale = scale_ref[...].astype(x.dtype)                       # (1, C, 1)
    o_ref[...] = (x * scale).astype(o_ref.dtype)


# ----------------------------- wrapper ------------------------------------ #

def _device_kind():
    try:
        return jax.devices()[0].device_kind.lower()
    except Exception:
        return ""


def _physical_vmem_bytes():
    # v7x: 64 MiB per TensorCore; v5e/v6e: 128 MiB.
    return (64 << 20) if "v7" in _device_kind() else (128 << 20)


def channel_attention(x, w1, w2, *, force_tiled=False, hw_tile=None):
    """x: (B, C, H, W); w1: (hidden, C); w2: (C, hidden). Returns (B, C, H, W)."""
    assert jnp.issubdtype(x.dtype, jnp.floating), "ChannelAttention expects float input"
    B, C, H, W = x.shape
    HW = H * W
    hidden = w1.shape[0]
    itemsize = jnp.dtype(x.dtype).itemsize

    x3 = x.reshape(B, C, HW)

    # Weight transpose + zero-pad of the hidden dim (hoisted out of the grid loop,
    # kept in the original dtype). Padding is mathematically exact: padded hidden
    # units are 0 after ReLU and meet zero rows of W2.T.
    hd_pad = max(((hidden + 127) // 128) * 128, 128)
    w1t = jnp.pad(w1.T, ((0, 0), (0, hd_pad - hidden)))          # (C, hd_pad)
    w2t = jnp.pad(w2.T, ((0, hd_pad - hidden), (0, 0)))          # (hd_pad, C)

    physical_vmem = _physical_vmem_bytes()
    w_bytes = (w1t.size * jnp.dtype(w1t.dtype).itemsize
               + w2t.size * jnp.dtype(w2t.dtype).itemsize)
    tile_bytes = C * HW * itemsize
    # Double-buffered in + out tiles, double-buffered weights, headroom for
    # intermediates (f32 reduction temps for sub-32-bit inputs) and compiler scratch.
    headroom = (8 << 20) + (C * HW * 4 if itemsize < 4 else 0)
    fused_need = 4 * tile_bytes + 2 * w_bytes + headroom

    use_fused = (not force_tiled) and fused_need <= int(physical_vmem * 0.85)
    # v7x has 2 TensorCores; with a batch-only parallel grid and B == 1 one TC idles,
    # so prefer the tiled path (its rescale pass parallelises over HW tiles).
    if use_fused and B == 1 and HW >= 1024 and "v7" in _device_kind():
        use_fused = False

    if use_fused:
        vmem_limit = int(min(max(fused_need, 32 << 20), physical_vmem * 0.9))
        kernel = functools.partial(_fused_kernel, inv_hw=1.0 / HW)
        out = pl.pallas_call(
            kernel,
            out_shape=jax.ShapeDtypeStruct((B, C, HW), x.dtype),
            grid_spec=pltpu.PrefetchScalarGridSpec(
                num_scalar_prefetch=0,
                grid=(B,),
                in_specs=[
                    # Full (C, HW) block is legal even when HW % 128 != 0.
                    pl.BlockSpec((1, C, HW), lambda b: (b, 0, 0)),
                    pl.BlockSpec((C, hd_pad), lambda b: (0, 0)),
                    pl.BlockSpec((hd_pad, C), lambda b: (0, 0)),
                ],
                out_specs=pl.BlockSpec((1, C, HW), lambda b: (b, 0, 0)),
            ),
            compiler_params=pltpu.CompilerParams(
                dimension_semantics=("parallel",),
                vmem_limit_bytes=vmem_limit),
        )(x3, w1t, w2t)
        return out.reshape(B, C, H, W)

    # ------------------ tiled two-phase path (large C*HW / v7x) --------------- #
    if hw_tile is None:
        # Target ~4 MiB per x tile buffer, lane-dense multiple of 128.
        target = 4 << 20
        lanes = max(128, (target // max(1, C * itemsize)) // 128 * 128)
        hw_tile = int(min(lanes, ((HW + 127) // 128) * 128))
    else:
        hw_tile = int(max(128, (hw_tile // 128) * 128))
    n_hw = pl.cdiv(HW, hw_tile)

    pool_tile_bytes = C * hw_tile * itemsize
    pool_need = 2 * pool_tile_bytes + 2 * w_bytes + (8 << 20)
    pool_vmem = int(min(max(pool_need, 32 << 20), physical_vmem * 0.9))

    pool_kernel = functools.partial(
        _pool_mlp_kernel, hw_true=HW, hw_tile=hw_tile, inv_hw=1.0 / HW)

    scale = pl.pallas_call(
        pool_kernel,
        out_shape=jax.ShapeDtypeStruct((B, C, 1), jnp.float32),
        grid_spec=pltpu.PrefetchScalarGridSpec(
            num_scalar_prefetch=0,
            grid=(B, n_hw),
            in_specs=[
                pl.BlockSpec((1, C, hw_tile), lambda b, t: (b, 0, t)),
                pl.BlockSpec((C, hd_pad), lambda b, t: (0, 0)),
                pl.BlockSpec((hd_pad, C), lambda b, t: (0, 0)),
            ],
            out_specs=pl.BlockSpec((1, C, 1), lambda b, t: (b, 0, 0)),
            scratch_shapes=[pltpu.VMEM((1, C), jnp.float32),
                            pltpu.VMEM((1, C), jnp.float32)],
        ),
        compiler_params=pltpu.CompilerParams(
            dimension_semantics=("parallel", "arbitrary"),
            vmem_limit_bytes=pool_vmem),
    )(x3, w1t, w2t)

    rescale_need = 4 * pool_tile_bytes + (8 << 20)
    rescale_vmem = int(min(max(rescale_need, 32 << 20), physical_vmem * 0.9))

    out = pl.pallas_call(
        _rescale_kernel,
        out_shape=jax.ShapeDtypeStruct((B, C, HW), x.dtype),
        grid_spec=pltpu.PrefetchScalarGridSpec(
            num_scalar_prefetch=0,
            grid=(B, n_hw),
            in_specs=[
                pl.BlockSpec((1, C, hw_tile), lambda b, t: (b, 0, t)),
                pl.BlockSpec((1, C, 1), lambda b, t: (b, 0, 0)),
            ],
            out_specs=pl.BlockSpec((1, C, hw_tile), lambda b, t: (b, 0, t)),
        ),
        compiler_params=pltpu.CompilerParams(
            dimension_semantics=("parallel", "parallel"),
            vmem_limit_bytes=rescale_vmem),
    )(x3, scale)
    return out.reshape(B, C, H, W)


# ----------------------------- reference ---------------------------------- #

def channel_attention_ref(x, w1, w2):
    xf = x.astype(jnp.float32)
    avg = jnp.mean(xf, axis=(2, 3))
    mx = jnp.max(xf, axis=(2, 3))

    def mlp(v):
        return jnp.maximum(v @ w1.T, 0.0) @ w2.T

    scale = jax.nn.sigmoid(mlp(avg) + mlp(mx))
    return (xf * scale[:, :, None, None]).astype(x.dtype)


if __name__ == "__main__":
    B, C, H, W = 2, 4, 16, 16
    reduction_ratio = 8
    hidden = max(C // reduction_ratio, 1)

    key = jax.random.PRNGKey(0)
    kx, k1, k2 = jax.random.split(key, 3)

    x = jax.random.normal(kx, (B, C, H, W), dtype=jnp.float32)
    # Deterministic synthetic weights (nn.Linear weight shapes: (out, in)).
    w1 = jax.random.normal(k1, (hidden, C), dtype=jnp.float32) * (1.0 / jnp.sqrt(C))
    w2 = jax.random.normal(k2, (C, hidden), dtype=jnp.float32) * (1.0 / jnp.sqrt(hidden))

    # Fused (whole batch element per grid step) path.
    y = channel_attention(x, w1, w2)
    jax.block_until_ready(y)
    y_ref = channel_attention_ref(x, w1, w2)
    assert jnp.allclose(y, y_ref, atol=1e-5, rtol=1e-5), "mismatch (fused path)"

    # Non-multiple-of-128 spatial size: no pad/unpad HBM passes, full-extent block.
    x2 = jax.random.normal(kx, (B, C, 14, 14), dtype=jnp.float32)
    y2 = channel_attention(x2, w1, w2)
    jax.block_until_ready(y2)
    assert jnp.allclose(y2, channel_attention_ref(x2, w1, w2), atol=1e-5, rtol=1e-5), \
        "mismatch (fused path, ragged HW)"

    # Tiled two-phase path (auto-selected for large C*HW, e.g. on v7x); force it at
    # small shapes to exercise both kernels, including the ragged final HW tile.
    y3 = channel_attention(x, w1, w2, force_tiled=True, hw_tile=128)
    jax.block_until_ready(y3)
    assert jnp.allclose(y3, y_ref, atol=1e-5, rtol=1e-5), "mismatch (tiled path)"

    y4 = channel_attention(x2, w1, w2, force_tiled=True, hw_tile=128)
    jax.block_until_ready(y4)
    assert jnp.allclose(y4, channel_attention_ref(x2, w1, w2), atol=1e-5, rtol=1e-5), \
        "mismatch (tiled path, ragged HW tile)"

    print("KERNEL_OK")
</pallas_src>

<mosaic_0001>
module attributes {stable_mosaic.version = 11 : i64} {
  func.func @_fused_kernel(%arg0: i32, %arg1: memref<1x4x256xf32, #tpu.memory_space<vmem>>, %arg2: memref<4x128xf32, #tpu.memory_space<vmem>>, %arg3: memref<128x4xf32, #tpu.memory_space<vmem>>, %arg4: memref<1x4x256xf32, #tpu.memory_space<vmem>>) attributes {dimension_semantics = [#tpu.dimension_semantics<parallel>], iteration_bounds = array<i64: 2>, scalar_prefetch = 0 : i64, scratch_operands = 0 : i64, tpu.core_type = #tpu.core_type<tc>, window_params = [{transform_indices = @transform_0, window_bounds = array<i64: 1, 4, 256>}, {pipeline_mode = #tpu.pipeline_mode<synchronous>, transform_indices = @transform_1, window_bounds = array<i64: 4, 128>}, {pipeline_mode = #tpu.pipeline_mode<synchronous>, transform_indices = @transform_2, window_bounds = array<i64: 128, 4>}, {transform_indices = @transform_3, window_bounds = array<i64: 1, 4, 256>}]} {
    %c0 = arith.constant 0 : index
    %c0_0 = arith.constant 0 : index
    %c0_1 = arith.constant 0 : index
    %0 = vector.load %arg1[%c0, %c0_0, %c0_1] : memref<1x4x256xf32, #tpu.memory_space<vmem>>, vector<1x4x256xf32>
    %cst = arith.constant dense<0.000000e+00> : vector<1x4xf32>
    %1 = vector.multi_reduction <add>, %0, %cst [2] : vector<1x4x256xf32> to vector<1x4xf32>
    %cst_2 = arith.constant 3.906250e-03 : f32
    %2 = vector.broadcast %cst_2 : f32 to vector<1x4xf32>
    %3 = arith.mulf %1, %2 : vector<1x4xf32>
    %cst_3 = arith.constant dense<0xFF800000> : vector<1x4xf32>
    %4 = vector.multi_reduction <maximumf>, %0, %cst_3 [2] : vector<1x4x256xf32> to vector<1x4xf32>
    %5 = tpu.concatenate %3, %4 in 0 : vector<1x4xf32>, vector<1x4xf32> -> vector<2x4xf32>
    %c0_4 = arith.constant 0 : index
    %c0_5 = arith.constant 0 : index
    %6 = vector.load %arg2[%c0_4, %c0_5] : memref<4x128xf32, #tpu.memory_space<vmem>>, vector<4x128xf32>
    %cst_6 = arith.constant dense<0.000000e+00> : vector<2x128xf32>
    %7 = tpu.matmul %5, %6, %cst_6 {dimension_numbers = #tpu.dot_dimension_numbers<[1], [0], [0], [1], [0, 0, 1, 1], [], []>} : vector<2x4xf32>, vector<4x128xf32>, vector<2x128xf32> -> vector<2x128xf32>
    %cst_7 = arith.constant 0.000000e+00 : f32
    %8 = vector.broadcast %cst_7 : f32 to vector<2x128xf32>
    %9 = arith.maximumf %7, %8 : vector<2x128xf32>
    %c0_8 = arith.constant 0 : index
    %c0_9 = arith.constant 0 : index
    %10 = vector.load %arg3[%c0_8, %c0_9] : memref<128x4xf32, #tpu.memory_space<vmem>>, vector<128x4xf32>
    %cst_10 = arith.constant dense<0.000000e+00> : vector<2x4xf32>
    %11 = tpu.matmul %9, %10, %cst_10 {dimension_numbers = #tpu.dot_dimension_numbers<[1], [0], [0], [1], [0, 0, 1, 1], [], []>} : vector<2x128xf32>, vector<128x4xf32>, vector<2x4xf32> -> vector<2x4xf32>
    %12 = vector.extract_strided_slice %11 {offsets = [0, 0], sizes = [1, 4], strides = [1, 1]} : vector<2x4xf32> to vector<1x4xf32>
    %13 = vector.extract_strided_slice %11 {offsets = [1, 0], sizes = [1, 4], strides = [1, 1]} : vector<2x4xf32> to vector<1x4xf32>
    %14 = arith.addf %12, %13 : vector<1x4xf32>
    %15 = arith.negf %14 : vector<1x4xf32>
    %16 = math.exp %15 : vector<1x4xf32>
    %cst_11 = arith.constant 1.000000e+00 : f32
    %17 = vector.broadcast %cst_11 : f32 to vector<1x4xf32>
    %18 = arith.addf %17, %16 : vector<1x4xf32>
    %19 = arith.divf %17, %18 : vector<1x4xf32>
    %20 = vector.shape_cast %19 : vector<1x4xf32> to vector<1x4x1xf32>
    %21 = vector.broadcast %20 : vector<1x4x1xf32> to vector<1x4x256xf32>
    %22 = arith.mulf %0, %21 : vector<1x4x256xf32>
    %c0_12 = arith.constant 0 : index
    %c0_13 = arith.constant 0 : index
    %c0_14 = arith.constant 0 : index
    %23 = vector.load %arg4[%c0_12, %c0_13, %c0_14] : memref<1x4x256xf32, #tpu.memory_space<vmem>>, vector<1x4x256xf32>
    tpu.vector_store %arg4[%c0_12, %c0_13, %c0_14], %22 {strides = array<i32>} : memref<1x4x256xf32, #tpu.memory_space<vmem>>, vector<1x4x256xf32>,
    return
  }
  func.func @transform_0(%arg0: i32) -> (i32, i32, i32) {
    %c0_i32 = arith.constant 0 : i32
    %c0_i32_0 = arith.constant 0 : i32
    %c0_i32_1 = arith.constant 0 : i32
    return %arg0, %c0_i32, %c0_i32_0 : i32, i32, i32
  }
  func.func @transform_1(%arg0: i32) -> (i32, i32) {
    %c0_i32 = arith.constant 0 : i32
    %c0_i32_0 = arith.constant 0 : i32
    %c0_i32_1 = arith.constant 0 : i32
    return %c0_i32, %c0_i32_0 : i32, i32
  }
  func.func @transform_2(%arg0: i32) -> (i32, i32) {
    %c0_i32 = arith.constant 0 : i32
    %c0_i32_0 = arith.constant 0 : i32
    %c0_i32_1 = arith.constant 0 : i32
    return %c0_i32, %c0_i32_0 : i32, i32
  }
  func.func @transform_3(%arg0: i32) -> (i32, i32, i32) {
    %c0_i32 = arith.constant 0 : i32
    %c0_i32_0 = arith.constant 0 : i32
    %c0_i32_1 = arith.constant 0 : i32
    return %arg0, %c0_i32, %c0_i32_0 : i32, i32, i32
  }
}

</mosaic_0001>

<llo_original>
// kernel: tpu_custom_call.1
$region0: #{tpu_custom_call.1}
  #allocation0 [shape = 'u32[]', space=smem, size = 0x4, offset = 0x4, fixed_abs, tag = 'smem constant byte address 0x4 - core index']
  #allocation1 [shape = 'u32[144,128]{1,0:T(1,128)}', space=vmem, size = 0x12000, scoped, tag = 'internal scratch']
  %s0 = inlined_call_operand.vmem [shape: f32[2,4,256], index: 0, kind: input, shape index: {}]
  %s1 = inlined_call_operand.vmem [shape: f32[4,128], index: 1, kind: input, shape index: {}]
  %s2 = inlined_call_operand.vmem [shape: f32[128,4], index: 2, kind: input, shape index: {}]
  %s3 = inlined_call_operand.hbm [shape: f32[2,4,256], index: 3, kind: output, shape index: {}]
  %s4 = sld [smem:[#allocation0]]
  $region45: #{tpu_custom_call.1} parent=0
    _
  %s6 = ssub.s32 1, %s4
  %s7 = scalar_select 0, %s6, %s4
  $region1: #{tpu_custom_call.1} parent=0
    #allocation2 [shape = 'u8[8192]{0}', space=vmem, size = 0x2000, scoped, tag = 'output window, operand 0']
    #allocation3 [shape = 's32[2]{0}', space=sflag, size = 0x8, scoped, tag = 'scoped memory for tpu_custom_call.1']
    %8 = vsyncpa [#allocation3], 0
    %s9 = scalar_lea.sflag [#allocation3], 1
    %10 = vsyncpa %s9, 0
    loop: start=0, step=1, limit=4
    $region2: #{tpu_custom_call.1} parent=1 // loop_pre_header
      _
    $region3: #{tpu_custom_call.1} parent=1 // loop_header
      %s12 = sphi 0, %s16
      %p13 = scmp.ge.s32.totalorder %s12, 4
      %s22 = sphi 0, %s24
      %s25 = sphi 0, %s22
      %s26 = sphi 0, %s25
      %s42 = sphi 0, %s26
      %s46 = sphi 0, %s46
      %s48 = sphi 0, %s46
      %s49 = sphi 0, %s48
      %s63 = sphi 0, %s49
      %s67 = sphi 0, %s67
      %s69 = sphi 0, %s67
      %s70 = sphi 0, %s69
      %s84 = sphi 0, %s70
      %s90 = sphi 0, %s92
      %s93 = sphi 0, %s90
      %s94 = sphi 0, %s93
      %s110 = sphi 0, %s94
    $region4: #{tpu_custom_call.1} parent=1 // loop_header_branch
      %15 = sbr.rel (%p13) target = $region8
    $region5: #{tpu_custom_call.1} parent=1 // loop_body
      %s17 = ssub.s32 %s12, 1
      %s18 = ssub.s32 %s12, 2
      %s19 = sadd.s32 %s12, 1
      %s20 = ssub.s32 %s12, %s19
      %p21 = scmp.eq.s32.totalorder %s20, 0
      %s23 = sadd.s32 %s22, 1
      %s24 = scalar_select %p21, %s22, %s23
      %p27 = pneg %p21
      %p28 = scmp.eq.s32.totalorder %s12, 1
      %p29 = por %p27, %p28
      %p30 = scmp.ne.s32.totalorder %s22, %s25
      %p31 = scmp.eq.s32.totalorder %s12, 0
      %p32 = por %p30, %p31
      %p33 = scmp.ne.s32.totalorder %s22, %s25
      %p34 = scmp.eq.s32.totalorder %s17, 1
      %p35 = por %p33, %p34
      %p36 = scmp.ne.s32.totalorder %s25, %s26
      %p37 = scmp.eq.s32.totalorder %s17, 0
      %p38 = por %p36, %p37
      %p39 = scmp.ne.s32.totalorder %s25, %s26
      %p40 = scmp.eq.s32.totalorder %s18, 1
      %p41 = por %p39, %p40
      %p43 = scmp.ne.s32.totalorder %s26, %s42
      %p44 = scmp.eq.s32.totalorder %s18, 0
      %p45 = por %p43, %p44
      %s47 = sadd.s32 %s46, 1
      %p50 = scmp.eq.s32.totalorder %s12, 1
      %p51 = scmp.ne.s32.totalorder %s46, %s48
      %p52 = scmp.eq.s32.totalorder %s12, 0
      %p53 = por %p51, %p52
      %p54 = scmp.ne.s32.totalorder %s46, %s48
      %p55 = scmp.eq.s32.totalorder %s17, 1
      %p56 = por %p54, %p55
      %p57 = scmp.ne.s32.totalorder %s48, %s49
      %p58 = scmp.eq.s32.totalorder %s17, 0
      %p59 = por %p57, %p58
      %p60 = scmp.ne.s32.totalorder %s48, %s49
      %p61 = scmp.eq.s32.totalorder %s18, 1
      %p62 = por %p60, %p61
      %p64 = scmp.ne.s32.totalorder %s49, %s63
      %p65 = scmp.eq.s32.totalorder %s18, 0
      %p66 = por %p64, %p65
      %s68 = sadd.s32 %s67, 1
      %p71 = scmp.eq.s32.totalorder %s12, 1
      %p72 = scmp.ne.s32.totalorder %s67, %s69
      %p73 = scmp.eq.s32.totalorder %s12, 0
      %p74 = por %p72, %p73
      %p75 = scmp.ne.s32.totalorder %s67, %s69
      %p76 = scmp.eq.s32.totalorder %s17, 1
      %p77 = por %p75, %p76
      %p78 = scmp.ne.s32.totalorder %s69, %s70
      %p79 = scmp.eq.s32.totalorder %s17, 0
      %p80 = por %p78, %p79
      %p81 = scmp.ne.s32.totalorder %s69, %s70
      %p82 = scmp.eq.s32.totalorder %s18, 1
      %p83 = por %p81, %p82
      %p85 = scmp.ne.s32.totalorder %s70, %s84
      %p86 = scmp.eq.s32.totalorder %s18, 0
      %p87 = por %p85, %p86
      %s88 = ssub.s32 %s12, %s19
      %p89 = scmp.eq.s32.totalorder %s88, 0
      %s91 = sadd.s32 %s90, 1
      %s92 = scalar_select %p89, %s90, %s91
      %p95 = pneg %p89
      %p96 = scmp.eq.s32.totalorder %s12, 1
      %p97 = por %p95, %p96
      %p98 = scmp.ne.s32.totalorder %s90, %s93
      %p99 = scmp.eq.s32.totalorder %s12, 0
      %p100 = por %p98, %p99
      %p101 = scmp.ne.s32.totalorder %s90, %s93
      %p102 = scmp.eq.s32.totalorder %s17, 1
      %p103 = por %p101, %p102
      %p104 = scmp.ne.s32.totalorder %s93, %s94
      %p105 = scmp.eq.s32.totalorder %s17, 0
      %p106 = por %p104, %p105
      %p107 = scmp.ne.s32.totalorder %s93, %s94
      %p108 = scmp.eq.s32.totalorder %s18, 1
      %p109 = por %p107, %p108
      %p111 = scmp.ne.s32.totalorder %s94, %s110
      %p112 = scmp.eq.s32.totalorder %s18, 0
      %p113 = por %p111, %p112
      %p114 = scmp.le.s32.totalorder 1, %s12
      %p115 = scmp.lt.s32.totalorder %s12, 3
      %p116 = pnand %p114, %p115
      %p117 = pneg %p116
      // Predicated region
      $region9: #{tpu_custom_call.1} parent=5 // pred_check
        _
      $region10: #{tpu_custom_call.1} parent=5 // pred_check_branch
        %119 = sbr.rel (%p116) target = $region12
      $region11: #{tpu_custom_call.1} parent=5 // pred_region
        %s120 = ssub.s32 %s12, 1
        // Predicated region
        $region13: #{tpu_custom_call.1} parent=11 // pred_check
          %p121 = pneg %p59
        $region14: #{tpu_custom_call.1} parent=11 // pred_check_branch
          %123 = sbr.rel (%p121) target = $region16
        $region15: #{tpu_custom_call.1} parent=11 // pred_region
          _
        $region16: #{tpu_custom_call.1} parent=11 // pred_fallthru
          _
        // Predicated region
        $region17: #{tpu_custom_call.1} parent=11 // pred_check
          %p124 = pneg %p80
        $region18: #{tpu_custom_call.1} parent=11 // pred_check_branch
          %126 = sbr.rel (%p124) target = $region20
        $region19: #{tpu_custom_call.1} parent=11 // pred_region
          _
        $region20: #{tpu_custom_call.1} parent=11 // pred_fallthru
          _
      $region12: #{tpu_custom_call.1} parent=5 // pred_fallthru
        _
      %p127 = scmp.lt.s32.totalorder %s12, 2
      // Predicated region
      $region21: #{tpu_custom_call.1} parent=5 // pred_check
        %p128 = pneg %p127
      $region22: #{tpu_custom_call.1} parent=5 // pred_check_branch
        %130 = sbr.rel (%p128) target = $region24
      $region23: #{tpu_custom_call.1} parent=5 // pred_region
        // Predicated region
        $region25: #{tpu_custom_call.1} parent=23 // pred_check
          %p131 = pneg %p32
        $region26: #{tpu_custom_call.1} parent=23 // pred_check_branch
          %133 = sbr.rel (%p131) target = $region28
        $region27: #{tpu_custom_call.1} parent=23 // pred_region
          %p134 = scmp.lt.s32.totalorder %s12, 1
          %s135 = scalar_select %p134, %s12, 1
          %s136 = smul.addr %s135, 2
          %s137 = smul.addr %s136, 4
          %s138 = scalar_lea.vmem %s0, %s137
        $region28: #{tpu_custom_call.1} parent=23 // pred_fallthru
          _
      $region24: #{tpu_custom_call.1} parent=5 // pred_fallthru
        _
      %p139 = scmp.le.s32.totalorder 1, %s12
      %p140 = scmp.lt.s32.totalorder %s12, 3
      %p141 = pnand %p139, %p140
      %p142 = pneg %p141
      // Predicated region
      $region29: #{tpu_custom_call.1} parent=5 // pred_check
        _
      $region30: #{tpu_custom_call.1} parent=5 // pred_check_branch
        %144 = sbr.rel (%p141) target = $region32
      $region31: #{tpu_custom_call.1} parent=5 // pred_region
        %s145 = ssub.s32 %s12, 1
        %p146 = scmp.lt.s32.totalorder %s17, 1
        %s147 = scalar_select %p146, %s17, 1
        %s148 = smul.addr %s147, 2
        %s149 = smul.addr %s148, 4
        %s150 = scalar_lea.vmem %s0, %s149
        %p151 = pneg %p38
        %p152 = pneg %p35
        %p153 = pneg %p59
        %p154 = pneg %p56
        %p155 = pneg %p80
        %p156 = pneg %p77
        %p157 = pneg %p106
        %p158 = pneg %p103
        %s159 = sand.u32 %s93, 1
        %s160 = scalar_lea.sflag [#allocation3], %s159
        %s161 = sand.u32 %s93, 1
        %s162 = smul.addr %s161, 8
        %s163 = scalar_lea.vmem [#allocation2], %s162
        %p164 = scmp.lt.s32.totalorder %s17, 1
        %s165 = scalar_select %p164, %s17, 1
        %s166 = smul.addr %s165, 2
        %s167 = smul.addr %s166, 4
        %s168 = scalar_lea.vmem %s0, %s167
        %v169 = vld [vmem:[%s168] sm:$0xff]
        %v171 = vcombine.high %v169, %v169
        %vm173 = vcmask 1043456
        %v174 = vsel %vm173, %v169, 0.0
        %v175 = vsel %vm173, %v171, 0.0
        %v176 = vadd.f32 %v174, %v175
        %177 = vadd.xlane.f32.xlu0 %v176
        %v178 = vpop.xlane.xlu0 %177
        %v179 = vmul.f32 %v178, 0.00390625
        %v180 = vsel %vm173, %v169, -inf
        %v181 = vsel %vm173, %v171, -inf
        %v182 = vmax.f32 %v180, %v181
        %183 = vmax.xlane.f32.xlu0 %v182
        %v184 = vpop.xlane.xlu0 %183
        %v186 = vlaneseq
        %v187 = vand.u32 %v186, 127
        %v188 = vlaneseq
        %v189 = vshrl.u32 %v188, 7
        %v190 = vsub.s32 %v187, %v189
        %v191 = vrot.slane %v179, %v190
        %v194 = vlaneseq
        %v195 = vshrl.u32 %v194, 7
        %v196 = vsub.s32 %v187, %v195
        %v197 = vrot.slane %v184, %v196
        %vm199 = vcmask 1040384
        %v200 = vsel %vm199, %v191, %v197
        %v201 = vld [vmem:[%s1] sm:$0xf]
        %vm202 = vcmask 31744
        %v204 = vsel %vm202, %v200, 0
        %v207 = vsel %vm173, %v201, 0
        %209 = vmatprep.subr.mxu0 0.0
        %210 = vmatpush1.msra.mxu0 %v207
        %211 = vmatprep.subr.mxu0 0.0
        %212 = vmatpush1.msra.mxu0 0.0
        %213 = vmatprep.subr.mxu0 0.0
        %214 = vmatpush1.msra.mxu0 0.0
        %215 = vmatprep.subr.mxu0 0.0
        %216 = vmatpush1.msra.mxu0 0.0
        %217 = vmatprep.subr.mxu0 0.0
        %218 = vmatpush1.msra.mxu0 0.0
        %219 = vmatprep.subr.mxu0 0.0
        %220 = vmatpush1.msra.mxu0 0.0
        %221 = vmatprep.subr.mxu0 0.0
        %222 = vmatpush1.msra.mxu0 0.0
        %223 = vmatprep.subr.mxu0 0.0
        %224 = vmatpush1.msra.mxu0 0.0
        %225 = vmatprep.subr.mxu0 0.0
        %226 = vmatpush1.msra.mxu0 0.0
        %227 = vmatprep.subr.mxu0 0.0
        %228 = vmatpush1.msra.mxu0 0.0
        %229 = vmatprep.subr.mxu0 0.0
        %230 = vmatpush1.msra.mxu0 0.0
        %231 = vmatprep.subr.mxu0 0.0
        %232 = vmatpush1.msra.mxu0 0.0
        %233 = vmatprep.subr.mxu0 0.0
        %234 = vmatpush1.msra.mxu0 0.0
        %235 = vmatprep.subr.mxu0 0.0
        %236 = vmatpush1.msra.mxu0 0.0
        %237 = vmatprep.subr.mxu0 0.0
        %238 = vmatpush1.msra.mxu0 0.0
        %239 = vmatprep.subr.mxu0 0.0
        %240 = vmatpush1.msra.mxu0 0.0
        %241 = vmatprep.subr.mxu0 0.0
        %242 = vmatpush1.msra.mxu0 0.0
        %243 = vmatprep.subr.mxu0 0.0
        %244 = vmatpush1.msra.mxu0 0.0
        %245 = vmatprep.subr.mxu0 0.0
        %246 = vmatpush1.msra.mxu0 0.0
        %247 = vmatprep.subr.mxu0 0.0
        %248 = vmatpush1.msra.mxu0 0.0
        %249 = vmatprep.subr.mxu0 0.0
        %250 = vmatpush1.msra.mxu0 0.0
        %251 = vmatprep.subr.mxu0 0.0
        %252 = vmatpush1.msra.mxu0 0.0
        %253 = vmatprep.subr.mxu0 0.0
        %254 = vmatpush1.msra.mxu0 0.0
        %255 = vmatprep.subr.mxu0 0.0
        %256 = vmatpush1.msra.mxu0 0.0
        %257 = vmatprep.subr.mxu0 0.0
        %258 = vmatpush1.msra.mxu0 0.0
        %259 = vmatprep.subr.mxu0 0.0
        %260 = vmatpush1.msra.mxu0 0.0
        %261 = vmatprep.subr.mxu0 0.0
        %262 = vmatpush1.msra.mxu0 0.0
        %263 = vmatprep.subr.mxu0 0.0
        %264 = vmatpush1.msra.mxu0 0.0
        %265 = vmatprep.subr.mxu0 0.0
        %266 = vmatpush1.msra.mxu0 0.0
        %267 = vmatprep.subr.mxu0 0.0
        %268 = vmatpush1.msra.mxu0 0.0
        %269 = vmatprep.subr.mxu0 0.0
        %270 = vmatpush1.msra.mxu0 0.0
        %271 = vmatprep.subr.mxu0 0.0
        %272 = vmatpush1.msra.mxu0 0.0
        %273 = vmatprep.mubr.f32.mxu0 0.0
        %274 = vmatmul.mubr.f32.gmra.mrb[0].mxu0 %v204
        %v275 = vpop.f32.mrb[0].mxu0
        %v276 = vadd.f32 0.0, %v275
        %v277 = vpop.f32.mrb[0].mxu0
        %278 = vdwg.mxu0
        %v279 = vmax.f32 %v276, 0.0
        %v280 = vld [vmem:[%s2] sm:$0xff]
        %v281 = vld [vmem:[%s2 + $0x8] sm:$0xff]
        %v282 = vld [vmem:[%s2 + $0x10] sm:$0xff]
        %v283 = vld [vmem:[%s2 + $0x18] sm:$0xff]
        %v284 = vld [vmem:[%s2 + $0x20] sm:$0xff]
        %v285 = vld [vmem:[%s2 + $0x28] sm:$0xff]
        %v286 = vld [vmem:[%s2 + $0x30] sm:$0xff]
        %v287 = vld [vmem:[%s2 + $0x38] sm:$0xff]
        %v288 = vld [vmem:[%s2 + $0x40] sm:$0xff]
        %v289 = vld [vmem:[%s2 + $0x48] sm:$0xff]
        %v290 = vld [vmem:[%s2 + $0x50] sm:$0xff]
        %v291 = vld [vmem:[%s2 + $0x58] sm:$0xff]
        %v292 = vld [vmem:[%s2 + $0x60] sm:$0xff]
        %v293 = vld [vmem:[%s2 + $0x68] sm:$0xff]
        %v294 = vld [vmem:[%s2 + $0x70] sm:$0xff]
        %v295 = vld [vmem:[%s2 + $0x78] sm:$0xff]
        %296 = vmatprep.subr.mxu0 0.0
        %297 = vmatpush1.msra.mxu0 %v280
        %298 = vmatprep.subr.mxu0 0.0
        %299 = vmatpush1.msra.mxu0 %v281
        %300 = vmatprep.subr.mxu0 0.0
        %301 = vmatpush1.msra.mxu0 %v282
        %302 = vmatprep.subr.mxu0 0.0
        %303 = vmatpush1.msra.mxu0 %v283
        %304 = vmatprep.subr.mxu0 0.0
        %305 = vmatpush1.msra.mxu0 %v284
        %306 = vmatprep.subr.mxu0 0.0
        %307 = vmatpush1.msra.mxu0 %v285
        %308 = vmatprep.subr.mxu0 0.0
        %309 = vmatpush1.msra.mxu0 %v286
        %310 = vmatprep.subr.mxu0 0.0
        %311 = vmatpush1.msra.mxu0 %v287
        %312 = vmatprep.subr.mxu0 0.0
        %313 = vmatpush1.msra.mxu0 %v288
        %314 = vmatprep.subr.mxu0 0.0
        %315 = vmatpush1.msra.mxu0 %v289
        %316 = vmatprep.subr.mxu0 0.0
        %317 = vmatpush1.msra.mxu0 %v290
        %318 = vmatprep.subr.mxu0 0.0
        %319 = vmatpush1.msra.mxu0 %v291
        %320 = vmatprep.subr.mxu0 0.0
        %321 = vmatpush1.msra.mxu0 %v292
        %322 = vmatprep.subr.mxu0 0.0
        %323 = vmatpush1.msra.mxu0 %v293
        %324 = vmatprep.subr.mxu0 0.0
        %325 = vmatpush1.msra.mxu0 %v294
        %326 = vmatprep.subr.mxu0 0.0
        %327 = vmatpush1.msra.mxu0 %v295
        %328 = vmatprep.subr.mxu0 0.0
        %329 = vmatpush1.msra.mxu0 0.0
        %330 = vmatprep.subr.mxu0 0.0
        %331 = vmatpush1.msra.mxu0 0.0
        %332 = vmatprep.subr.mxu0 0.0
        %333 = vmatpush1.msra.mxu0 0.0
        %334 = vmatprep.subr.mxu0 0.0
        %335 = vmatpush1.msra.mxu0 0.0
        %336 = vmatprep.subr.mxu0 0.0
        %337 = vmatpush1.msra.mxu0 0.0
        %338 = vmatprep.subr.mxu0 0.0
        %339 = vmatpush1.msra.mxu0 0.0
        %340 = vmatprep.subr.mxu0 0.0
        %341 = vmatpush1.msra.mxu0 0.0
        %342 = vmatprep.subr.mxu0 0.0
        %343 = vmatpush1.msra.mxu0 0.0
        %344 = vmatprep.subr.mxu0 0.0
        %345 = vmatpush1.msra.mxu0 0.0
        %346 = vmatprep.subr.mxu0 0.0
        %347 = vmatpush1.msra.mxu0 0.0
        %348 = vmatprep.subr.mxu0 0.0
        %349 = vmatpush1.msra.mxu0 0.0
        %350 = vmatprep.subr.mxu0 0.0
        %351 = vmatpush1.msra.mxu0 0.0
        %352 = vmatprep.subr.mxu0 0.0
        %353 = vmatpush1.msra.mxu0 0.0
        %354 = vmatprep.subr.mxu0 0.0
        %355 = vmatpush1.msra.mxu0 0.0
        %356 = vmatprep.subr.mxu0 0.0
        %357 = vmatpush1.msra.mxu0 0.0
        %358 = vmatprep.subr.mxu0 0.0
        %359 = vmatpush1.msra.mxu0 0.0
        %360 = vmatprep.mubr.f32.mxu0 0.0
        %361 = vmatmul.mubr.f32.gmra.mrb[0].mxu0 %v279
        %v362 = vpop.f32.mrb[0].mxu0
        %v363 = vadd.f32 0.0, %v362
        %v364 = vpop.f32.mrb[0].mxu0
        %365 = vdwg.mxu0
        %v367 = vrot.slane %v363, 1
        %v369 = vadd.f32 %v363, %v367
        %v370 = vxor.u32 %v369, 2147483648
        %v371 = vmul.f32 %v370, 1.442695
        %v372 = vpow.pop %v371
        %v373 = vadd.f32 %v372, 1.0
        %v374 = vrcp.pop %v373
        %v375 = vmul.f32 1.0, %v374
        %v376 = vlaneseq
        %v377 = vshrl.u32 %v376, 7
        %v378 = vsub.s32 0, %v377
        %v379 = vrot.slane %v375, %v378
        %381 = vbcast.lane.b32.xlu0 %v379, 256
        %v382 = vpop.permute.xlu0 %381
        %v385 = vunpack.c.l.s4 839922192
        %v386 = vunpack.c.0.s8 %v385
        %v387 = vlaneseq
        %v388 = vshrl.u32 %v387, 7
        %v389 = vsub.s32 %v386, %v388
        %v390 = vrot.slane %v382, %v389
        %v392 = vmul.f32 %v169, %v390
        %393 = vst [vmem:[%s163] sm:$0xff] %v392
        %s394 = sand.u32 %s93, 1
        %s395 = scalar_lea.sflag [#allocation3], %s394
        %s396 = sand.u32 %s93, 1
        %s397 = smul.addr %s396, 8
        %s398 = scalar_lea.vmem [#allocation2], %s397
        // Predicated region
        $region33: #{tpu_custom_call.1} parent=31 // pred_check
          %p399 = pneg %p103
        $region34: #{tpu_custom_call.1} parent=31 // pred_check_branch
          %401 = sbr.rel (%p399) target = $region36
        $region35: #{tpu_custom_call.1} parent=31 // pred_region
          %s403 = ssub.s32 128, 128
          %404 = vsyncadd %s395, %s403
          %s405 = smul.addr %s17, 2
          %s406 = smul.addr %s405, 64
          %s407 = scalar_lea.hbm %s3, %s406
          %s409 = sshll.u32 %s398, 4
          %s410 = int_to_ptr.vmem [resolvable:$true] %s409
          %412 = dma.vmem_to_hbm [thread:$0]  %s410, 128, %s407, %s395
        $region36: #{tpu_custom_call.1} parent=31 // pred_fallthru
          _
      $region32: #{tpu_custom_call.1} parent=5 // pred_fallthru
        _
      %p413 = scmp.le.s32.totalorder 2, %s12
      // Predicated region
      $region37: #{tpu_custom_call.1} parent=5 // pred_check
        %p414 = pneg %p413
      $region38: #{tpu_custom_call.1} parent=5 // pred_check_branch
        %416 = sbr.rel (%p414) target = $region40
      $region39: #{tpu_custom_call.1} parent=5 // pred_region
        %s417 = ssub.s32 %s12, 2
        // Predicated region
        $region41: #{tpu_custom_call.1} parent=39 // pred_check
          %p418 = pneg %p109
        $region42: #{tpu_custom_call.1} parent=39 // pred_check_branch
          %420 = sbr.rel (%p418) target = $region44
        $region43: #{tpu_custom_call.1} parent=39 // pred_region
          %s421 = sand.u32 %s94, 1
          %s422 = scalar_lea.sflag [#allocation3], %s421
          %s423 = sand.u32 %s94, 1
          %s424 = smul.addr %s423, 8
          %s425 = scalar_lea.vmem [#allocation2], %s424
          %426 = dma.done %s422, 128
        $region44: #{tpu_custom_call.1} parent=39 // pred_fallthru
          _
      $region40: #{tpu_custom_call.1} parent=5 // pred_fallthru
        _
    $region6: #{tpu_custom_call.1} parent=1 // loop_footer
      %s16 = sadd.s32 1, %s12
    $region7: #{tpu_custom_call.1} parent=1 // loop_footer_branch
      %11 = sbr.rel target = $region3
    $region8: #{tpu_custom_call.1} parent=1 // loop_exit
      _
    %427 = vsyncpa [#allocation3], 1
    %s428 = scalar_lea.sflag [#allocation3], 1
    %429 = vsyncpa %s428, 1

</llo_original>
